<compile_context>
chip_gen: v7x
topology: tpu7x:2x2x1
jax: 0.10.0
libtpu: 0.0.40
codegen_flags: <defaults>
</compile_context>

<pallas_src>
import functools

import jax
import jax.numpy as jnp
from jax.experimental import pallas as pl
from jax.experimental.pallas import tpu as pltpu

H, W = 6, 7                      # fixed by the module: np.reshape(X, (-1, 1, 6, 7))
HW = H * W
KH, KW = 3, 3
NTAPS = KH * KW
EPS = 1e-5                       # torch BatchNorm2d default
LANE = 128


def conv_bn_relu_kernel(x_ref, p_ref, o_ref, *, n_valid):
    # x_ref : (1, Np)   zero-padded flattened input, n = b*HW + h*W + w for n < n_valid
    # p_ref : (C, 11)   packed params: cols 0..8 conv taps (k = dy*3+dx), 9 gamma, 10 beta
    # o_ref : (C, Np)   lane-dense output; columns >= n_valid are junk (sliced in wrapper)
    Np = x_ref.shape[1]
    x = x_ref[...]                                           # (1, Np)

    # ---- per-column (h, w) coordinates + validity, built in-kernel (one-time) -------
    # Exact float floor-division (values << 2^24, so / and floor are exact); avoids
    # integer vector div/mod which may not lower on the VPU.
    nf = jax.lax.broadcasted_iota(jnp.int32, (1, Np), 1).astype(jnp.float32)
    lane_valid = (nf < float(n_valid)).astype(jnp.float32)   # zero the padded tail
    q = jnp.floor(nf / float(HW))                            # batch index
    r = nf - float(HW) * q                                   # h*W + w  in [0, HW)
    h = jnp.floor(r / float(W))
    w = r - float(W) * h

    # factorized tap-validity masks: mask(dy, dx) = row_ok[dy] * col_ok[dx]
    row_ok, col_ok = [], []
    for d in (-1.0, 0.0, 1.0):
        hh = h + d
        ww = w + d
        row_ok.append(((hh >= 0.0) & (hh < float(H))).astype(jnp.float32) * lane_valid)
        col_ok.append(((ww >= 0.0) & (ww < float(W))).astype(jnp.float32))

    # ---- 3x3 'same' conv (single input channel) as 9 rolled + masked FMAs -----------
    # Conv bias intentionally omitted: cancelled exactly by the BN mean subtraction
    # below (training-mode batch statistics).
    acc = None
    for dy in range(KH):
        for dx in range(KW):
            k = dy * KW + dx
            s = (dy - 1) * W + (dx - 1)                      # flat shift, |s| <= 8
            shifted = x if s == 0 else pltpu.roll(x, shift=(-s) % Np, axis=1)
            row = shifted * (row_ok[dy] * col_ok[dx])        # (1, Np)
            term = p_ref[:, k:k + 1] * row                   # (C,1)*(1,Np) -> (C,Np)
            acc = term if acc is None else acc + term

    # ---- BatchNorm2d (training mode, biased batch stats) + ReLU, fused FMA ----------
    # TODO(synk): nn.BatchNorm2d also updates running_mean/running_var in training;
    # that stateful side effect is not emulated (forward output does not use it).
    inv_n = jnp.float32(1.0 / n_valid)
    mean = jnp.sum(acc, axis=1, keepdims=True) * inv_n       # (C, 1)
    diff = (acc - mean) * lane_valid                         # mask padded tail
    var = jnp.maximum(jnp.sum(diff * diff, axis=1, keepdims=True) * inv_n, 0.0)
    gamma = p_ref[:, NTAPS:NTAPS + 1]                        # (C, 1)
    beta = p_ref[:, NTAPS + 1:NTAPS + 2]                     # (C, 1)
    scale = gamma * jax.lax.rsqrt(var + EPS)                 # (C, 1)
    offset = beta - mean * scale                             # (C, 1)

    # single lane-dense store of the whole slab
    o_ref[...] = jnp.maximum(acc * scale + offset, 0.0)


def conv_block_forward(X, weight, bias, gamma, beta):
    """Forward pass of ConvBlock.

    X      : anything reshapeable to (-1, 1, 6, 7)
    weight : (C, 1, 3, 3) Conv2d weight (torch layout)
    bias   : (C,)         Conv2d bias -- unused: training-mode BN cancels it exactly
    gamma  : (C,)         BatchNorm2d weight
    beta   : (C,)         BatchNorm2d bias
    returns (B, C, 6, 7) float32
    """
    del bias  # per-channel constant, cancelled by BN mean subtraction (training mode)

    xf = jnp.asarray(X, jnp.float32).reshape(-1, HW)         # (B, HW): pure reshape
    B = xf.shape[0]
    N = B * HW
    C = weight.shape[0]
    Np = max(LANE, ((N + LANE - 1) // LANE) * LANE)          # lane-aligned width
    xflat = jnp.pad(xf.reshape(1, N), ((0, 0), (0, Np - N)))  # (1, Np), zero tail

    w_taps = jnp.asarray(weight, jnp.float32).reshape(C, NTAPS)           # (C, 9)
    params = jnp.concatenate(
        [w_taps,
         jnp.asarray(gamma, jnp.float32).reshape(C, 1),
         jnp.asarray(beta, jnp.float32).reshape(C, 1)], axis=1)           # (C, 11)

    # Single grid step: whole batch easily fits VMEM at these sizes and training-mode
    # BN needs full-batch stats.
    # TODO(synk): for very large B (esp. v7x's 64 MiB VMEM), tile B on a grid axis with
    # two-pass BN stats (accumulate ssum/ssq in VMEM scratch, then normalize pass) and
    # mark the batch axis "parallel" to shard across TensorCores.
    out = pl.pallas_call(
        functools.partial(conv_bn_relu_kernel, n_valid=N),
        out_shape=jax.ShapeDtypeStruct((C, Np), jnp.float32),
        grid=(1,),
        in_specs=[
            pl.BlockSpec((1, Np), lambda i: (0, 0)),
            pl.BlockSpec((C, NTAPS + 2), lambda i: (0, 0)),
        ],
        out_specs=pl.BlockSpec((C, Np), lambda i: (0, 0)),
        compiler_params=pltpu.CompilerParams(dimension_semantics=("arbitrary",)),
    )(xflat, params)

    # wrapper-side layout plumbing on a few KB: (C, Np) -> (B, C, 6, 7)
    y = out[:, :N].reshape(C, B, HW)
    return jnp.transpose(y, (1, 0, 2)).reshape(B, C, H, W)


def _reference(X, weight, bias, gamma, beta):
    """Pure-JAX reference matching the torch module (training-mode BN, with conv bias)."""
    x = jnp.asarray(X, jnp.float32).reshape(-1, 1, H, W)
    conv = jax.lax.conv_general_dilated(
        x, jnp.asarray(weight, jnp.float32), window_strides=(1, 1), padding="SAME",
        dimension_numbers=("NCHW", "OIHW", "NCHW"))
    conv = conv + jnp.asarray(bias, jnp.float32).reshape(1, -1, 1, 1)
    mean = jnp.mean(conv, axis=(0, 2, 3), keepdims=True)
    var = jnp.mean((conv - mean) ** 2, axis=(0, 2, 3), keepdims=True)
    xhat = (conv - mean) * jax.lax.rsqrt(var + EPS)
    y = xhat * jnp.asarray(gamma, jnp.float32).reshape(1, -1, 1, 1) \
        + jnp.asarray(beta, jnp.float32).reshape(1, -1, 1, 1)
    return jnp.maximum(y, 0.0)


if __name__ == "__main__":
    out_channels = 8
    batch = 4

    key = jax.random.PRNGKey(0)
    k_x, k_w, k_b, k_g, k_bt = jax.random.split(key, 5)

    # deterministic synthetic parameters (shapes from ConvBlock.__init__)
    weight = jax.random.normal(k_w, (out_channels, 1, KH, KW), jnp.float32) * 0.3
    bias = jax.random.normal(k_b, (out_channels,), jnp.float32) * 0.1
    gamma = 1.0 + 0.1 * jax.random.normal(k_g, (out_channels,), jnp.float32)
    beta = 0.1 * jax.random.normal(k_bt, (out_channels,), jnp.float32)

    # input: anything reshapeable to (-1, 1, 6, 7)
    X = jax.random.normal(k_x, (batch, H, W), jnp.float32)

    fwd = jax.jit(conv_block_forward)
    out = jax.block_until_ready(fwd(X, weight, bias, gamma, beta))

    ref = _reference(X, weight, bias, gamma, beta)
    assert out.shape == (batch, out_channels, H, W), out.shape
    max_err = float(jnp.max(jnp.abs(out - ref)))
    assert jnp.allclose(out, ref, atol=1e-4, rtol=1e-4), max_err

    print("KERNEL_OK")
</pallas_src>

<mosaic_0001>
module attributes {stable_mosaic.version = 11 : i64} {
  func.func @conv_bn_relu_kernel(%arg0: i32, %arg1: memref<1x256xf32, #tpu.memory_space<vmem>>, %arg2: memref<8x11xf32, #tpu.memory_space<vmem>>, %arg3: memref<8x256xf32, #tpu.memory_space<vmem>>) attributes {dimension_semantics = [#tpu.dimension_semantics<arbitrary>], iteration_bounds = array<i64: 1>, scalar_prefetch = 0 : i64, scratch_operands = 0 : i64, tpu.core_type = #tpu.core_type<tc>, window_params = [{pipeline_mode = #tpu.pipeline_mode<synchronous>, transform_indices = @transform_0, window_bounds = array<i64: 1, 256>}, {pipeline_mode = #tpu.pipeline_mode<synchronous>, transform_indices = @transform_1, window_bounds = array<i64: 8, 11>}, {pipeline_mode = #tpu.pipeline_mode<synchronous>, transform_indices = @transform_2, window_bounds = array<i64: 8, 256>}]} {
    %c0 = arith.constant 0 : index
    %c0_0 = arith.constant 0 : index
    %0 = vector.load %arg1[%c0, %c0_0] : memref<1x256xf32, #tpu.memory_space<vmem>>, vector<1x256xf32>
    %1 = tpu.iota {dimensions = array<i32: 1>} : vector<1x256xi32>
    %2 = arith.sitofp %1 : vector<1x256xi32> to vector<1x256xf32>
    %cst = arith.constant 1.680000e+02 : f32
    %3 = vector.broadcast %cst : f32 to vector<1x256xf32>
    %4 = arith.cmpf olt, %2, %3 : vector<1x256xf32>
    %5 = arith.extui %4 : vector<1x256xi1> to vector<1x256xi32>
    %6 = arith.sitofp %5 : vector<1x256xi32> to vector<1x256xf32>
    %cst_1 = arith.constant 4.200000e+01 : f32
    %7 = vector.broadcast %cst_1 : f32 to vector<1x256xf32>
    %8 = arith.divf %2, %7 : vector<1x256xf32>
    %9 = math.floor %8 : vector<1x256xf32>
    %cst_2 = arith.constant 4.200000e+01 : f32
    %10 = vector.broadcast %cst_2 : f32 to vector<1x256xf32>
    %11 = arith.mulf %10, %9 : vector<1x256xf32>
    %12 = arith.subf %2, %11 : vector<1x256xf32>
    %cst_3 = arith.constant 7.000000e+00 : f32
    %13 = vector.broadcast %cst_3 : f32 to vector<1x256xf32>
    %14 = arith.divf %12, %13 : vector<1x256xf32>
    %15 = math.floor %14 : vector<1x256xf32>
    %cst_4 = arith.constant 7.000000e+00 : f32
    %16 = vector.broadcast %cst_4 : f32 to vector<1x256xf32>
    %17 = arith.mulf %16, %15 : vector<1x256xf32>
    %18 = arith.subf %12, %17 : vector<1x256xf32>
    %cst_5 = arith.constant -1.000000e+00 : f32
    %19 = vector.broadcast %cst_5 : f32 to vector<1x256xf32>
    %20 = arith.addf %15, %19 : vector<1x256xf32>
    %cst_6 = arith.constant -1.000000e+00 : f32
    %21 = vector.broadcast %cst_6 : f32 to vector<1x256xf32>
    %22 = arith.addf %18, %21 : vector<1x256xf32>
    %cst_7 = arith.constant 0.000000e+00 : f32
    %23 = vector.broadcast %cst_7 : f32 to vector<1x256xf32>
    %24 = arith.cmpf oge, %20, %23 : vector<1x256xf32>
    %cst_8 = arith.constant 6.000000e+00 : f32
    %25 = vector.broadcast %cst_8 : f32 to vector<1x256xf32>
    %26 = arith.cmpf olt, %20, %25 : vector<1x256xf32>
    %27 = arith.andi %24, %26 : vector<1x256xi1>
    %28 = arith.extui %27 : vector<1x256xi1> to vector<1x256xi32>
    %29 = arith.sitofp %28 : vector<1x256xi32> to vector<1x256xf32>
    %30 = arith.mulf %29, %6 : vector<1x256xf32>
    %cst_9 = arith.constant 0.000000e+00 : f32
    %31 = vector.broadcast %cst_9 : f32 to vector<1x256xf32>
    %32 = arith.cmpf oge, %22, %31 : vector<1x256xf32>
    %cst_10 = arith.constant 7.000000e+00 : f32
    %33 = vector.broadcast %cst_10 : f32 to vector<1x256xf32>
    %34 = arith.cmpf olt, %22, %33 : vector<1x256xf32>
    %35 = arith.andi %32, %34 : vector<1x256xi1>
    %36 = arith.extui %35 : vector<1x256xi1> to vector<1x256xi32>
    %37 = arith.sitofp %36 : vector<1x256xi32> to vector<1x256xf32>
    %cst_11 = arith.constant 0.000000e+00 : f32
    %38 = vector.broadcast %cst_11 : f32 to vector<1x256xf32>
    %39 = arith.addf %15, %38 : vector<1x256xf32>
    %cst_12 = arith.constant 0.000000e+00 : f32
    %40 = vector.broadcast %cst_12 : f32 to vector<1x256xf32>
    %41 = arith.addf %18, %40 : vector<1x256xf32>
    %cst_13 = arith.constant 0.000000e+00 : f32
    %42 = vector.broadcast %cst_13 : f32 to vector<1x256xf32>
    %43 = arith.cmpf oge, %39, %42 : vector<1x256xf32>
    %cst_14 = arith.constant 6.000000e+00 : f32
    %44 = vector.broadcast %cst_14 : f32 to vector<1x256xf32>
    %45 = arith.cmpf olt, %39, %44 : vector<1x256xf32>
    %46 = arith.andi %43, %45 : vector<1x256xi1>
    %47 = arith.extui %46 : vector<1x256xi1> to vector<1x256xi32>
    %48 = arith.sitofp %47 : vector<1x256xi32> to vector<1x256xf32>
    %49 = arith.mulf %48, %6 : vector<1x256xf32>
    %cst_15 = arith.constant 0.000000e+00 : f32
    %50 = vector.broadcast %cst_15 : f32 to vector<1x256xf32>
    %51 = arith.cmpf oge, %41, %50 : vector<1x256xf32>
    %cst_16 = arith.constant 7.000000e+00 : f32
    %52 = vector.broadcast %cst_16 : f32 to vector<1x256xf32>
    %53 = arith.cmpf olt, %41, %52 : vector<1x256xf32>
    %54 = arith.andi %51, %53 : vector<1x256xi1>
    %55 = arith.extui %54 : vector<1x256xi1> to vector<1x256xi32>
    %56 = arith.sitofp %55 : vector<1x256xi32> to vector<1x256xf32>
    %cst_17 = arith.constant 1.000000e+00 : f32
    %57 = vector.broadcast %cst_17 : f32 to vector<1x256xf32>
    %58 = arith.addf %15, %57 : vector<1x256xf32>
    %cst_18 = arith.constant 1.000000e+00 : f32
    %59 = vector.broadcast %cst_18 : f32 to vector<1x256xf32>
    %60 = arith.addf %18, %59 : vector<1x256xf32>
    %cst_19 = arith.constant 0.000000e+00 : f32
    %61 = vector.broadcast %cst_19 : f32 to vector<1x256xf32>
    %62 = arith.cmpf oge, %58, %61 : vector<1x256xf32>
    %cst_20 = arith.constant 6.000000e+00 : f32
    %63 = vector.broadcast %cst_20 : f32 to vector<1x256xf32>
    %64 = arith.cmpf olt, %58, %63 : vector<1x256xf32>
    %65 = arith.andi %62, %64 : vector<1x256xi1>
    %66 = arith.extui %65 : vector<1x256xi1> to vector<1x256xi32>
    %67 = arith.sitofp %66 : vector<1x256xi32> to vector<1x256xf32>
    %68 = arith.mulf %67, %6 : vector<1x256xf32>
    %cst_21 = arith.constant 0.000000e+00 : f32
    %69 = vector.broadcast %cst_21 : f32 to vector<1x256xf32>
    %70 = arith.cmpf oge, %60, %69 : vector<1x256xf32>
    %cst_22 = arith.constant 7.000000e+00 : f32
    %71 = vector.broadcast %cst_22 : f32 to vector<1x256xf32>
    %72 = arith.cmpf olt, %60, %71 : vector<1x256xf32>
    %73 = arith.andi %70, %72 : vector<1x256xi1>
    %74 = arith.extui %73 : vector<1x256xi1> to vector<1x256xi32>
    %75 = arith.sitofp %74 : vector<1x256xi32> to vector<1x256xf32>
    %c8_i32 = arith.constant 8 : i32
    %76 = tpu.dynamic_rotate %0 by %c8_i32 dim 1 : vector<1x256xf32>, i32 -> vector<1x256xf32>
    %77 = arith.mulf %30, %37 : vector<1x256xf32>
    %78 = arith.mulf %76, %77 : vector<1x256xf32>
    %c0_23 = arith.constant 0 : index
    %c0_24 = arith.constant 0 : index
    %79 = vector.load %arg2[%c0_23, %c0_24] : memref<8x11xf32, #tpu.memory_space<vmem>>, vector<8x1xf32>
    %80 = vector.broadcast %79 : vector<8x1xf32> to vector<8x256xf32>
    %81 = vector.broadcast %78 : vector<1x256xf32> to vector<8x256xf32>
    %82 = arith.mulf %80, %81 : vector<8x256xf32>
    %c7_i32 = arith.constant 7 : i32
    %83 = tpu.dynamic_rotate %0 by %c7_i32 dim 1 : vector<1x256xf32>, i32 -> vector<1x256xf32>
    %84 = arith.mulf %30, %56 : vector<1x256xf32>
    %85 = arith.mulf %83, %84 : vector<1x256xf32>
    %c0_25 = arith.constant 0 : index
    %c1 = arith.constant 1 : index
    %86 = vector.load %arg2[%c0_25, %c1] : memref<8x11xf32, #tpu.memory_space<vmem>>, vector<8x1xf32>
    %87 = vector.broadcast %86 : vector<8x1xf32> to vector<8x256xf32>
    %88 = vector.broadcast %85 : vector<1x256xf32> to vector<8x256xf32>
    %89 = arith.mulf %87, %88 : vector<8x256xf32>
    %90 = arith.addf %82, %89 : vector<8x256xf32>
    %c6_i32 = arith.constant 6 : i32
    %91 = tpu.dynamic_rotate %0 by %c6_i32 dim 1 : vector<1x256xf32>, i32 -> vector<1x256xf32>
    %92 = arith.mulf %30, %75 : vector<1x256xf32>
    %93 = arith.mulf %91, %92 : vector<1x256xf32>
    %c0_26 = arith.constant 0 : index
    %c2 = arith.constant 2 : index
    %94 = vector.load %arg2[%c0_26, %c2] : memref<8x11xf32, #tpu.memory_space<vmem>>, vector<8x1xf32>
    %95 = vector.broadcast %94 : vector<8x1xf32> to vector<8x256xf32>
    %96 = vector.broadcast %93 : vector<1x256xf32> to vector<8x256xf32>
    %97 = arith.mulf %95, %96 : vector<8x256xf32>
    %98 = arith.addf %90, %97 : vector<8x256xf32>
    %c1_i32 = arith.constant 1 : i32
    %99 = tpu.dynamic_rotate %0 by %c1_i32 dim 1 : vector<1x256xf32>, i32 -> vector<1x256xf32>
    %100 = arith.mulf %49, %37 : vector<1x256xf32>
    %101 = arith.mulf %99, %100 : vector<1x256xf32>
    %c0_27 = arith.constant 0 : index
    %c3 = arith.constant 3 : index
    %102 = vector.load %arg2[%c0_27, %c3] : memref<8x11xf32, #tpu.memory_space<vmem>>, vector<8x1xf32>
    %103 = vector.broadcast %102 : vector<8x1xf32> to vector<8x256xf32>
    %104 = vector.broadcast %101 : vector<1x256xf32> to vector<8x256xf32>
    %105 = arith.mulf %103, %104 : vector<8x256xf32>
    %106 = arith.addf %98, %105 : vector<8x256xf32>
    %107 = arith.mulf %49, %56 : vector<1x256xf32>
    %108 = arith.mulf %0, %107 : vector<1x256xf32>
    %c0_28 = arith.constant 0 : index
    %c4 = arith.constant 4 : index
    %109 = vector.load %arg2[%c0_28, %c4] : memref<8x11xf32, #tpu.memory_space<vmem>>, vector<8x1xf32>
    %110 = vector.broadcast %109 : vector<8x1xf32> to vector<8x256xf32>
    %111 = vector.broadcast %108 : vector<1x256xf32> to vector<8x256xf32>
    %112 = arith.mulf %110, %111 : vector<8x256xf32>
    %113 = arith.addf %106, %112 : vector<8x256xf32>
    %c255_i32 = arith.constant 255 : i32
    %114 = tpu.dynamic_rotate %0 by %c255_i32 dim 1 : vector<1x256xf32>, i32 -> vector<1x256xf32>
    %115 = arith.mulf %49, %75 : vector<1x256xf32>
    %116 = arith.mulf %114, %115 : vector<1x256xf32>
    %c0_29 = arith.constant 0 : index
    %c5 = arith.constant 5 : index
    %117 = vector.load %arg2[%c0_29, %c5] : memref<8x11xf32, #tpu.memory_space<vmem>>, vector<8x1xf32>
    %118 = vector.broadcast %117 : vector<8x1xf32> to vector<8x256xf32>
    %119 = vector.broadcast %116 : vector<1x256xf32> to vector<8x256xf32>
    %120 = arith.mulf %118, %119 : vector<8x256xf32>
    %121 = arith.addf %113, %120 : vector<8x256xf32>
    %c250_i32 = arith.constant 250 : i32
    %122 = tpu.dynamic_rotate %0 by %c250_i32 dim 1 : vector<1x256xf32>, i32 -> vector<1x256xf32>
    %123 = arith.mulf %68, %37 : vector<1x256xf32>
    %124 = arith.mulf %122, %123 : vector<1x256xf32>
    %c0_30 = arith.constant 0 : index
    %c6 = arith.constant 6 : index
    %125 = vector.load %arg2[%c0_30, %c6] : memref<8x11xf32, #tpu.memory_space<vmem>>, vector<8x1xf32>
    %126 = vector.broadcast %125 : vector<8x1xf32> to vector<8x256xf32>
    %127 = vector.broadcast %124 : vector<1x256xf32> to vector<8x256xf32>
    %128 = arith.mulf %126, %127 : vector<8x256xf32>
    %129 = arith.addf %121, %128 : vector<8x256xf32>
    %c249_i32 = arith.constant 249 : i32
    %130 = tpu.dynamic_rotate %0 by %c249_i32 dim 1 : vector<1x256xf32>, i32 -> vector<1x256xf32>
    %131 = arith.mulf %68, %56 : vector<1x256xf32>
    %132 = arith.mulf %130, %131 : vector<1x256xf32>
    %c0_31 = arith.constant 0 : index
    %c7 = arith.constant 7 : index
    %133 = vector.load %arg2[%c0_31, %c7] : memref<8x11xf32, #tpu.memory_space<vmem>>, vector<8x1xf32>
    %134 = vector.broadcast %133 : vector<8x1xf32> to vector<8x256xf32>
    %135 = vector.broadcast %132 : vector<1x256xf32> to vector<8x256xf32>
    %136 = arith.mulf %134, %135 : vector<8x256xf32>
    %137 = arith.addf %129, %136 : vector<8x256xf32>
    %c248_i32 = arith.constant 248 : i32
    %138 = tpu.dynamic_rotate %0 by %c248_i32 dim 1 : vector<1x256xf32>, i32 -> vector<1x256xf32>
    %139 = arith.mulf %68, %75 : vector<1x256xf32>
    %140 = arith.mulf %138, %139 : vector<1x256xf32>
    %c0_32 = arith.constant 0 : index
    %c8 = arith.constant 8 : index
    %141 = vector.load %arg2[%c0_32, %c8] : memref<8x11xf32, #tpu.memory_space<vmem>>, vector<8x1xf32>
    %142 = vector.broadcast %141 : vector<8x1xf32> to vector<8x256xf32>
    %143 = vector.broadcast %140 : vector<1x256xf32> to vector<8x256xf32>
    %144 = arith.mulf %142, %143 : vector<8x256xf32>
    %145 = arith.addf %137, %144 : vector<8x256xf32>
    %cst_33 = arith.constant dense<0.000000e+00> : vector<8xf32>
    %146 = vector.multi_reduction <add>, %145, %cst_33 [1] : vector<8x256xf32> to vector<8xf32>
    %147 = vector.shape_cast %146 : vector<8xf32> to vector<8x1xf32>
    %cst_34 = arith.constant 0.00595238106 : f32
    %148 = vector.broadcast %cst_34 : f32 to vector<8x1xf32>
    %149 = arith.mulf %147, %148 : vector<8x1xf32>
    %150 = vector.broadcast %149 : vector<8x1xf32> to vector<8x256xf32>
    %151 = arith.subf %145, %150 : vector<8x256xf32>
    %152 = vector.broadcast %6 : vector<1x256xf32> to vector<8x256xf32>
    %153 = arith.mulf %151, %152 : vector<8x256xf32>
    %154 = arith.mulf %153, %153 : vector<8x256xf32>
    %cst_35 = arith.constant dense<0.000000e+00> : vector<8xf32>
    %155 = vector.multi_reduction <add>, %154, %cst_35 [1] : vector<8x256xf32> to vector<8xf32>
    %156 = vector.shape_cast %155 : vector<8xf32> to vector<8x1xf32>
    %cst_36 = arith.constant 0.00595238106 : f32
    %157 = vector.broadcast %cst_36 : f32 to vector<8x1xf32>
    %158 = arith.mulf %156, %157 : vector<8x1xf32>
    %cst_37 = arith.constant 0.000000e+00 : f32
    %159 = vector.broadcast %cst_37 : f32 to vector<8x1xf32>
    %160 = arith.maximumf %158, %159 : vector<8x1xf32>
    %c0_38 = arith.constant 0 : index
    %c9 = arith.constant 9 : index
    %161 = vector.load %arg2[%c0_38, %c9] : memref<8x11xf32, #tpu.memory_space<vmem>>, vector<8x1xf32>
    %c0_39 = arith.constant 0 : index
    %c10 = arith.constant 10 : index
    %162 = vector.load %arg2[%c0_39, %c10] : memref<8x11xf32, #tpu.memory_space<vmem>>, vector<8x1xf32>
    %cst_40 = arith.constant 9.99999974E-6 : f32
    %163 = vector.broadcast %cst_40 : f32 to vector<8x1xf32>
    %164 = arith.addf %160, %163 : vector<8x1xf32>
    %165 = math.rsqrt %164 : vector<8x1xf32>
    %166 = arith.mulf %161, %165 : vector<8x1xf32>
    %167 = arith.mulf %149, %166 : vector<8x1xf32>
    %168 = arith.subf %162, %167 : vector<8x1xf32>
    %169 = vector.broadcast %166 : vector<8x1xf32> to vector<8x256xf32>
    %170 = arith.mulf %145, %169 : vector<8x256xf32>
    %171 = vector.broadcast %168 : vector<8x1xf32> to vector<8x256xf32>
    %172 = arith.addf %170, %171 : vector<8x256xf32>
    %cst_41 = arith.constant 0.000000e+00 : f32
    %173 = vector.broadcast %cst_41 : f32 to vector<8x256xf32>
    %174 = arith.maximumf %172, %173 : vector<8x256xf32>
    %c0_42 = arith.constant 0 : index
    %c0_43 = arith.constant 0 : index
    %175 = vector.load %arg3[%c0_42, %c0_43] : memref<8x256xf32, #tpu.memory_space<vmem>>, vector<8x256xf32>
    tpu.vector_store %arg3[%c0_42, %c0_43], %174 {strides = array<i32>} : memref<8x256xf32, #tpu.memory_space<vmem>>, vector<8x256xf32>,
    return
  }
  func.func @transform_0(%arg0: i32) -> (i32, i32) {
    %c0_i32 = arith.constant 0 : i32
    %c0_i32_0 = arith.constant 0 : i32
    %c0_i32_1 = arith.constant 0 : i32
    return %c0_i32, %c0_i32_0 : i32, i32
  }
  func.func @transform_1(%arg0: i32) -> (i32, i32) {
    %c0_i32 = arith.constant 0 : i32
    %c0_i32_0 = arith.constant 0 : i32
    %c0_i32_1 = arith.constant 0 : i32
    return %c0_i32, %c0_i32_0 : i32, i32
  }
  func.func @transform_2(%arg0: i32) -> (i32, i32) {
    %c0_i32 = arith.constant 0 : i32
    %c0_i32_0 = arith.constant 0 : i32
    %c0_i32_1 = arith.constant 0 : i32
    return %c0_i32, %c0_i32_0 : i32, i32
  }
}

</mosaic_0001>

<llo_original>
// kernel: conv_block_forward.1
$region0: #{conv_block_forward.1}
  #allocation0 [shape = 'u32[]', space=smem, size = 0x4, offset = 0x4, fixed_abs, tag = 'smem constant byte address 0x4 - core index']
  #allocation1 [shape = 'u32[144,128]{1,0:T(1,128)}', space=vmem, size = 0x12000, scoped, tag = 'internal scratch']
  %s0 = inlined_call_operand.vmem [shape: f32[1,256], index: 0, kind: input, shape index: {}]
  %s1 = inlined_call_operand.vmem [shape: f32[8,11], index: 1, kind: input, shape index: {}]
  %s2 = inlined_call_operand.vmem [shape: f32[8,256], index: 2, kind: output, shape index: {}]
  %s3 = sld [smem:[#allocation0]]
  $region18: #{conv_block_forward.1} parent=0
    _
  %s5 = ssub.s32 1, %s3
  %s6 = scalar_select 0, %s5, %s3
  // Predicated region
  $region2: #{conv_block_forward.1} parent=0 // pred_check
    _
  $region3: #{conv_block_forward.1} parent=0 // pred_check_branch
    %8 = sbr.rel (0) target = $region5
  $region4: #{conv_block_forward.1} parent=0 // pred_region
    _
  $region5: #{conv_block_forward.1} parent=0 // pred_fallthru
    _
  // Predicated region
  $region6: #{conv_block_forward.1} parent=0 // pred_check
    _
  $region7: #{conv_block_forward.1} parent=0 // pred_check_branch
    %10 = sbr.rel (0) target = $region9
  $region8: #{conv_block_forward.1} parent=0 // pred_region
    _
  $region9: #{conv_block_forward.1} parent=0 // pred_fallthru
    _
  %v11 = vld [vmem:[%s0] sm:$0x3]
  %v12 = vlaneseq
  %v13 = vand.u32 %v12, 127
  %v14 = vadd.s32 %v13, 128
  %v15 = vcvt.s32.f32 %v13
  %v16 = vcvt.s32.f32 %v14
  %vm17 = vcmp.lt.f32.partialorder %v15, 168.0
  %vm18 = vcmp.lt.f32.partialorder %v16, 168.0
  %v19 = vsel %vm17, 1, 0
  %v20 = vsel %vm18, 1, 0
  %v21 = vcvt.s32.f32 %v19
  %v22 = vcvt.s32.f32 %v20
  %v23 = vrcp.pop 42.0
  %v24 = vmul.f32 %v15, %v23
  %v25 = vmul.f32 %v16, %v23
  %v26 = vfloor.f32 %v24
  %v27 = vfloor.f32 %v25
  %v28 = vmul.f32 %v26, 42.0
  %v29 = vmul.f32 %v27, 42.0
  %v30 = vsub.f32 %v15, %v28
  %v31 = vsub.f32 %v16, %v29
  %v32 = vrcp.pop 7.0
  %v33 = vmul.f32 %v30, %v32
  %v34 = vmul.f32 %v31, %v32
  %v35 = vfloor.f32 %v33
  %v36 = vfloor.f32 %v34
  %v37 = vmul.f32 %v35, 7.0
  %v38 = vmul.f32 %v36, 7.0
  %v39 = vsub.f32 %v30, %v37
  %v40 = vsub.f32 %v31, %v38
  %v41 = vadd.f32 %v35, -1.0
  %v42 = vadd.f32 %v36, -1.0
  %v43 = vadd.f32 %v39, -1.0
  %v44 = vadd.f32 %v40, -1.0
  %vm45 = vcmp.ge.f32.partialorder %v41, 0.0
  %vm46 = vcmp.ge.f32.partialorder %v42, 0.0
  %vm47 = vcmp.lt.f32.partialorder %v41, 6.0
  %vm48 = vcmp.lt.f32.partialorder %v42, 6.0
  %vm49 = vmand %vm45, %vm47
  %vm50 = vmand %vm46, %vm48
  %v51 = vsel %vm49, 1, 0
  %v52 = vsel %vm50, 1, 0
  %v53 = vcvt.s32.f32 %v51
  %v54 = vcvt.s32.f32 %v52
  %v55 = vmul.f32 %v53, %v21
  %v56 = vmul.f32 %v54, %v22
  %vm57 = vcmp.ge.f32.partialorder %v43, 0.0
  %vm58 = vcmp.ge.f32.partialorder %v44, 0.0
  %vm59 = vcmp.lt.f32.partialorder %v43, 7.0
  %vm60 = vcmp.lt.f32.partialorder %v44, 7.0
  %vm61 = vmand %vm57, %vm59
  %vm62 = vmand %vm58, %vm60
  %v63 = vsel %vm61, 1, 0
  %v64 = vsel %vm62, 1, 0
  %v65 = vcvt.s32.f32 %v63
  %v66 = vcvt.s32.f32 %v64
  %v67 = vadd.f32 %v35, 0.0
  %v68 = vadd.f32 %v36, 0.0
  %v69 = vadd.f32 %v39, 0.0
  %v70 = vadd.f32 %v40, 0.0
  %vm71 = vcmp.ge.f32.partialorder %v67, 0.0
  %vm72 = vcmp.ge.f32.partialorder %v68, 0.0
  %vm73 = vcmp.lt.f32.partialorder %v67, 6.0
  %vm74 = vcmp.lt.f32.partialorder %v68, 6.0
  %vm75 = vmand %vm71, %vm73
  %vm76 = vmand %vm72, %vm74
  %v77 = vsel %vm75, 1, 0
  %v78 = vsel %vm76, 1, 0
  %v79 = vcvt.s32.f32 %v77
  %v80 = vcvt.s32.f32 %v78
  %v81 = vmul.f32 %v79, %v21
  %v82 = vmul.f32 %v80, %v22
  %vm83 = vcmp.ge.f32.partialorder %v69, 0.0
  %vm84 = vcmp.ge.f32.partialorder %v70, 0.0
  %vm85 = vcmp.lt.f32.partialorder %v69, 7.0
  %vm86 = vcmp.lt.f32.partialorder %v70, 7.0
  %vm87 = vmand %vm83, %vm85
  %vm88 = vmand %vm84, %vm86
  %v89 = vsel %vm87, 1, 0
  %v90 = vsel %vm88, 1, 0
  %v91 = vcvt.s32.f32 %v89
  %v92 = vcvt.s32.f32 %v90
  %v93 = vadd.f32 %v35, 1.0
  %v94 = vadd.f32 %v36, 1.0
  %v95 = vadd.f32 %v39, 1.0
  %v96 = vadd.f32 %v40, 1.0
  %vm97 = vcmp.ge.f32.partialorder %v93, 0.0
  %vm98 = vcmp.ge.f32.partialorder %v94, 0.0
  %vm99 = vcmp.lt.f32.partialorder %v93, 6.0
  %vm100 = vcmp.lt.f32.partialorder %v94, 6.0
  %vm101 = vmand %vm97, %vm99
  %vm102 = vmand %vm98, %vm100
  %v103 = vsel %vm101, 1, 0
  %v104 = vsel %vm102, 1, 0
  %v105 = vcvt.s32.f32 %v103
  %v106 = vcvt.s32.f32 %v104
  %v107 = vmul.f32 %v105, %v21
  %v108 = vmul.f32 %v106, %v22
  %vm109 = vcmp.ge.f32.partialorder %v95, 0.0
  %vm110 = vcmp.ge.f32.partialorder %v96, 0.0
  %vm111 = vcmp.lt.f32.partialorder %v95, 7.0
  %vm112 = vcmp.lt.f32.partialorder %v96, 7.0
  %vm113 = vmand %vm109, %vm111
  %vm114 = vmand %vm110, %vm112
  %v115 = vsel %vm113, 1, 0
  %v116 = vsel %vm114, 1, 0
  %v117 = vcvt.s32.f32 %v115
  %v118 = vcvt.s32.f32 %v116
  %v120 = vlaneseq
  %v121 = vshrl.u32 %v120, 7
  %v122 = vsub.s32 0, %v121
  %v123 = vrot.slane %v11, %v122
  %v124 = vlaneseq
  %v125 = vshrl.u32 %v124, 7
  %v126 = vsub.s32 1, %v125
  %v127 = vrot.slane %v11, %v126
  %130 = vrot.lane.b32.xlu0 %v123, 8
  %v131 = vpop.permute.xlu0 %130
  %132 = vrot.lane.b32.xlu0 %v127, 8
  %v133 = vpop.permute.xlu0 %132
  %vm134 = vcmp.lt.s32.totalorder %v13, 8
  %v135 = vsel %vm134, %v131, %v133
  %v136 = vsel %vm134, %v133, %v131
  %v137 = vmul.f32 %v55, %v65
  %v138 = vmul.f32 %v56, %v66
  %v139 = vmul.f32 %v136, %v137
  %v140 = vmul.f32 %v135, %v138
  %v141 = vld [vmem:[%s1] sm:$0xff]
  %143 = vset.pattern.permute.xlu0 0
  %144 = vperm.xlu0 %143, %v141
  %v145 = vpop.permute.xlu0 %144
  %v147 = vlaneseq
  %v148 = vshrl.u32 %v147, 7
  %v149 = vsub.s32 0, %v148
  %v150 = vrot.slane %v139, %v149
  %v151 = vlaneseq
  %v152 = vshrl.u32 %v151, 7
  %v153 = vsub.s32 0, %v152
  %v154 = vrot.slane %v140, %v153
  %v155 = vmul.f32 %v145, %v150
  %v156 = vmul.f32 %v145, %v154
  %157 = vrot.lane.b32.xlu0 %v123, 7
  %v158 = vpop.permute.xlu0 %157
  %159 = vrot.lane.b32.xlu0 %v127, 7
  %v160 = vpop.permute.xlu0 %159
  %vm161 = vcmp.lt.s32.totalorder %v13, 7
  %v162 = vsel %vm161, %v158, %v160
  %v163 = vsel %vm161, %v160, %v158
  %v164 = vmul.f32 %v55, %v91
  %v165 = vmul.f32 %v56, %v92
  %v166 = vmul.f32 %v163, %v164
  %v167 = vmul.f32 %v162, %v165
  %168 = vset.pattern.permute.xlu0 1
  %169 = vperm.xlu0 %168, %v141
  %v170 = vpop.permute.xlu0 %169
  %v172 = vlaneseq
  %v173 = vshrl.u32 %v172, 7
  %v174 = vsub.s32 0, %v173
  %v175 = vrot.slane %v166, %v174
  %v176 = vlaneseq
  %v177 = vshrl.u32 %v176, 7
  %v178 = vsub.s32 0, %v177
  %v179 = vrot.slane %v167, %v178
  %v180 = vmul.f32 %v170, %v175
  %v181 = vmul.f32 %v170, %v179
  %v182 = vadd.f32 %v155, %v180
  %v183 = vadd.f32 %v156, %v181
  %184 = vrot.lane.b32.xlu0 %v123, 6
  %v185 = vpop.permute.xlu0 %184
  %186 = vrot.lane.b32.xlu0 %v127, 6
  %v187 = vpop.permute.xlu0 %186
  %vm188 = vcmp.lt.s32.totalorder %v13, 6
  %v189 = vsel %vm188, %v185, %v187
  %v190 = vsel %vm188, %v187, %v185
  %v191 = vmul.f32 %v55, %v117
  %v192 = vmul.f32 %v56, %v118
  %v193 = vmul.f32 %v190, %v191
  %v194 = vmul.f32 %v189, %v192
  %195 = vset.pattern.permute.xlu0 2
  %196 = vperm.xlu0 %195, %v141
  %v197 = vpop.permute.xlu0 %196
  %v199 = vlaneseq
  %v200 = vshrl.u32 %v199, 7
  %v201 = vsub.s32 0, %v200
  %v202 = vrot.slane %v193, %v201
  %v203 = vlaneseq
  %v204 = vshrl.u32 %v203, 7
  %v205 = vsub.s32 0, %v204
  %v206 = vrot.slane %v194, %v205
  %v207 = vmul.f32 %v197, %v202
  %v208 = vmul.f32 %v197, %v206
  %v209 = vadd.f32 %v182, %v207
  %v210 = vadd.f32 %v183, %v208
  %211 = vrot.lane.b32.xlu0 %v123, 1
  %v212 = vpop.permute.xlu0 %211
  %213 = vrot.lane.b32.xlu0 %v127, 1
  %v214 = vpop.permute.xlu0 %213
  %vm215 = vcmp.lt.s32.totalorder %v13, 1
  %v216 = vsel %vm215, %v212, %v214
  %v217 = vsel %vm215, %v214, %v212
  %v218 = vmul.f32 %v81, %v65
  %v219 = vmul.f32 %v82, %v66
  %v220 = vmul.f32 %v217, %v218
  %v221 = vmul.f32 %v216, %v219
  %222 = vset.pattern.permute.xlu0 3
  %223 = vperm.xlu0 %222, %v141
  %v224 = vpop.permute.xlu0 %223
  %v226 = vlaneseq
  %v227 = vshrl.u32 %v226, 7
  %v228 = vsub.s32 0, %v227
  %v229 = vrot.slane %v220, %v228
  %v230 = vlaneseq
  %v231 = vshrl.u32 %v230, 7
  %v232 = vsub.s32 0, %v231
  %v233 = vrot.slane %v221, %v232
  %v234 = vmul.f32 %v224, %v229
  %v235 = vmul.f32 %v224, %v233
  %v236 = vadd.f32 %v209, %v234
  %v237 = vadd.f32 %v210, %v235
  %v238 = vmul.f32 %v81, %v91
  %v239 = vmul.f32 %v82, %v92
  %v242 = vcombine.low %v238, %v239
  %v244 = vunpack.c.l.s4 1966171168
  %v245 = vunpack.c.0.s8 %v244
  %v246 = vlaneseq
  %v247 = vshrl.u32 %v246, 7
  %v248 = vsub.s32 %v245, %v247
  %v249 = vrot.slane %v242, %v248
  %v251 = vunpack.c.l.s4 1966171168
  %v252 = vunpack.c.0.s8 %v251
  %v253 = vlaneseq
  %v254 = vshrl.u32 %v253, 7
  %v255 = vsub.s32 %v252, %v254
  %v256 = vrot.slane %v249, %v255
  %v258 = vmul.f32 %v11, %v256
  %v259 = vld [vmem:[%s1] sm:$0xff]
  %261 = vset.pattern.permute.xlu0 4
  %262 = vperm.xlu0 %261, %v259
  %v263 = vpop.permute.xlu0 %262
  %v266 = vlaneseq
  %v267 = vshrl.u32 %v266, 7
  %v268 = vsub.s32 0, %v267
  %v269 = vrot.slane %v258, %v268
  %v270 = vlaneseq
  %v271 = vshrl.u32 %v270, 7
  %v272 = vsub.s32 1, %v271
  %v273 = vrot.slane %v258, %v272
  %v276 = vmul.f32 %v263, %v269
  %v277 = vmul.f32 %v263, %v273
  %v278 = vadd.f32 %v236, %v276
  %v279 = vadd.f32 %v237, %v277
  %280 = vrot.lane.b32.xlu0 %v123, 127
  %v281 = vpop.permute.xlu0 %280
  %282 = vrot.lane.b32.xlu0 %v127, 127
  %v283 = vpop.permute.xlu0 %282
  %vm284 = vcmp.lt.s32.totalorder %v13, 127
  %v285 = vsel %vm284, %v281, %v283
  %v286 = vsel %vm284, %v283, %v281
  %v287 = vmul.f32 %v81, %v117
  %v288 = vmul.f32 %v82, %v118
  %v289 = vmul.f32 %v285, %v287
  %v290 = vmul.f32 %v286, %v288
  %291 = vset.pattern.permute.xlu0 5
  %292 = vperm.xlu0 %291, %v259
  %v293 = vpop.permute.xlu0 %292
  %v295 = vlaneseq
  %v296 = vshrl.u32 %v295, 7
  %v297 = vsub.s32 0, %v296
  %v298 = vrot.slane %v289, %v297
  %v299 = vlaneseq
  %v300 = vshrl.u32 %v299, 7
  %v301 = vsub.s32 0, %v300
  %v302 = vrot.slane %v290, %v301
  %v303 = vmul.f32 %v293, %v298
  %v304 = vmul.f32 %v293, %v302
  %v305 = vadd.f32 %v278, %v303
  %v306 = vadd.f32 %v279, %v304
  %307 = vrot.lane.b32.xlu0 %v123, 122
  %v308 = vpop.permute.xlu0 %307
  %309 = vrot.lane.b32.xlu0 %v127, 122
  %v310 = vpop.permute.xlu0 %309
  %vm311 = vcmp.lt.s32.totalorder %v13, 122
  %v312 = vsel %vm311, %v308, %v310
  %v313 = vsel %vm311, %v310, %v308
  %v314 = vmul.f32 %v107, %v65
  %v315 = vmul.f32 %v108, %v66
  %v316 = vmul.f32 %v312, %v314
  %v317 = vmul.f32 %v313, %v315
  %318 = vset.pattern.permute.xlu0 6
  %319 = vperm.xlu0 %318, %v259
  %v320 = vpop.permute.xlu0 %319
  %v322 = vlaneseq
  %v323 = vshrl.u32 %v322, 7
  %v324 = vsub.s32 0, %v323
  %v325 = vrot.slane %v316, %v324
  %v326 = vlaneseq
  %v327 = vshrl.u32 %v326, 7
  %v328 = vsub.s32 0, %v327
  %v329 = vrot.slane %v317, %v328
  %v330 = vmul.f32 %v320, %v325
  %v331 = vmul.f32 %v320, %v329
  %v332 = vadd.f32 %v305, %v330
  %v333 = vadd.f32 %v306, %v331
  %334 = vrot.lane.b32.xlu0 %v123, 121
  %v335 = vpop.permute.xlu0 %334
  %336 = vrot.lane.b32.xlu0 %v127, 121
  %v337 = vpop.permute.xlu0 %336
  %vm338 = vcmp.lt.s32.totalorder %v13, 121
  %v339 = vsel %vm338, %v335, %v337
  %v340 = vsel %vm338, %v337, %v335
  %v341 = vmul.f32 %v107, %v91
  %v342 = vmul.f32 %v108, %v92
  %v343 = vmul.f32 %v339, %v341
  %v344 = vmul.f32 %v340, %v342
  %345 = vset.pattern.permute.xlu0 7
  %346 = vperm.xlu0 %345, %v259
  %v347 = vpop.permute.xlu0 %346
  %v349 = vlaneseq
  %v350 = vshrl.u32 %v349, 7
  %v351 = vsub.s32 0, %v350
  %v352 = vrot.slane %v343, %v351
  %v353 = vlaneseq
  %v354 = vshrl.u32 %v353, 7
  %v355 = vsub.s32 0, %v354
  %v356 = vrot.slane %v344, %v355
  %v357 = vmul.f32 %v347, %v352
  %v358 = vmul.f32 %v347, %v356
  %v359 = vadd.f32 %v332, %v357
  %v360 = vadd.f32 %v333, %v358
  %361 = vrot.lane.b32.xlu0 %v123, 120
  %v362 = vpop.permute.xlu0 %361
  %363 = vrot.lane.b32.xlu0 %v127, 120
  %v364 = vpop.permute.xlu0 %363
  %vm365 = vcmp.lt.s32.totalorder %v13, 120
  %v366 = vsel %vm365, %v362, %v364
  %v367 = vsel %vm365, %v364, %v362
  %v368 = vmul.f32 %v107, %v117
  %v369 = vmul.f32 %v108, %v118
  %v370 = vmul.f32 %v366, %v368
  %v371 = vmul.f32 %v367, %v369
  %372 = vset.pattern.permute.xlu0 8
  %373 = vperm.xlu0 %372, %v259
  %v374 = vpop.permute.xlu0 %373
  %v376 = vlaneseq
  %v377 = vshrl.u32 %v376, 7
  %v378 = vsub.s32 0, %v377
  %v379 = vrot.slane %v370, %v378
  %v380 = vlaneseq
  %v381 = vshrl.u32 %v380, 7
  %v382 = vsub.s32 0, %v381
  %v383 = vrot.slane %v371, %v382
  %v384 = vmul.f32 %v374, %v379
  %v385 = vmul.f32 %v374, %v383
  %v386 = vadd.f32 %v359, %v384
  %v387 = vadd.f32 %v360, %v385
  %v388 = vadd.f32 %v386, %v387
  %389 = vadd.xlane.f32.xlu0 %v388
  %v390 = vpop.xlane.xlu0 %389
  %v391 = vmul.f32 %v390, 0.005952381
  %v392 = vsub.f32 %v386, %v391
  %v393 = vsub.f32 %v387, %v391
  %v394 = vmul.f32 %v392, %v21
  %v395 = vmul.f32 %v393, %v22
  %v396 = vmul.f32 %v394, %v394
  %v397 = vmul.f32 %v395, %v395
  %v398 = vadd.f32 %v396, %v397
  %399 = vadd.xlane.f32.xlu0 %v398
  %v400 = vpop.xlane.xlu0 %399
  %v401 = vmul.f32 %v400, 0.005952381
  %v402 = vmax.f32 %v401, 0.0
  %v403 = vadd.f32 %v402, 1e-05
  %v404 = vrsqrt.pop %v403
  %v405 = vmul.f32 %v259, %v404
  %v406 = vmul.f32 %v391, %v405
  %408 = vrot.lane.b32.xlu0 %v406, 1
  %v409 = vpop.permute.xlu0 %408
  %v411 = vsub.f32 %v259, %v409
  %413 = vset.pattern.permute.xlu0 9
  %414 = vperm.xlu0 %413, %v405
  %v415 = vpop.permute.xlu0 %414
  %v417 = vmul.f32 %v386, %v415
  %v418 = vmul.f32 %v387, %v415
  %420 = vset.pattern.permute.xlu0 10
  %421 = vperm.xlu0 %420, %v411
  %v422 = vpop.permute.xlu0 %421
  %v424 = vadd.f32 %v417, %v422
  %v425 = vadd.f32 %v418, %v422
  %v426 = vmax.f32 %v424, 0.0
  %v427 = vmax.f32 %v425, 0.0
  %428 = vst [vmem:[%s2] sm:$0xff] %v426
  %429 = vst [vmem:[%s2 + $0x8] sm:$0xff] %v427
  // Predicated region
  $region10: #{conv_block_forward.1} parent=0 // pred_check
    _
  $region11: #{conv_block_forward.1} parent=0 // pred_check_branch
    %431 = sbr.rel (0) target = $region13
  $region12: #{conv_block_forward.1} parent=0 // pred_region
    _
  $region13: #{conv_block_forward.1} parent=0 // pred_fallthru
    _
  // Predicated region
  $region14: #{conv_block_forward.1} parent=0 // pred_check
    _
  $region15: #{conv_block_forward.1} parent=0 // pred_check_branch
    %433 = sbr.rel (0) target = $region17
  $region16: #{conv_block_forward.1} parent=0 // pred_region
    _
  $region17: #{conv_block_forward.1} parent=0 // pred_fallthru
    _

</llo_original>
